<compile_context>
chip_gen: v5e
topology: v5e:2x2
jax: 0.10.0
libtpu: 0.0.40
codegen_flags: <defaults>
</compile_context>

<pallas_src>
import functools
import math

import jax
import jax.numpy as jnp
from jax.experimental import pallas as pl
from jax.experimental.pallas import tpu as pltpu


def _round_up(x, m):
    return (x + m - 1) // m * m


# ----------------------------------------------------------------------------
# lane-roll helper (np.roll semantics).  A one-time probe, run at module import
# (i.e. before any kernel is traced), pins down pltpu.roll's shift-sign
# convention so the kernels are robust either way, including library import.
# ----------------------------------------------------------------------------
def _detect_roll_convention():
    def k(x_ref, o_ref):
        o_ref[...] = pltpu.roll(x_ref[...], 1, axis=1)

    x = jnp.tile(jnp.arange(128, dtype=jnp.float32)[None, :], (8, 1))
    out = pl.pallas_call(k, out_shape=jax.ShapeDtypeStruct((8, 128), jnp.float32))(x)
    return bool(out[0, 0] == 127.0)  # np.roll(row, 1)[0] == 127


_ROLL_MATCHES_NUMPY = _detect_roll_convention()


def _roll_lanes(x, np_shift):
    """result[..., i] = x[..., (i - np_shift) % L]   (np.roll semantics)."""
    L = x.shape[-1]
    s = (np_shift if _ROLL_MATCHES_NUMPY else -np_shift) % L
    if s == 0:
        return x
    return pltpu.roll(x, s, axis=x.ndim - 1)


# ----------------------------------------------------------------------------
# padded-flat activation layout helpers (plain-JAX glue; only used at the
# network entry and when extracting the 4 collected NCHW outputs)
# ----------------------------------------------------------------------------
def to_padded_flat(x_nchw, dtype=jnp.bfloat16):
    """(N, C, H, W) -> (N, C, Lp): zero ring around the spatial plane, flattened
    row-major onto the lane axis, tail-padded so Lp is a multiple of 128."""
    N, C, H, W = x_nchw.shape
    Hp, Wp = H + 2, W + 2
    Lp = _round_up(Hp * Wp, 128)
    xp = jnp.pad(x_nchw, ((0, 0), (0, 0), (1, 1), (1, 1))).reshape(N, C, Hp * Wp)
    if Lp > Hp * Wp:
        xp = jnp.pad(xp, ((0, 0), (0, 0), (0, Lp - Hp * Wp)))
    return xp.astype(dtype)


def padded_flat_to_nchw(x_pad, H, W):
    N, C, _ = x_pad.shape
    Hp, Wp = H + 2, W + 2
    return x_pad[:, :, : Hp * Wp].reshape(N, C, Hp, Wp)[:, :, 1 : H + 1, 1 : W + 1]


# ----------------------------------------------------------------------------
# Fused conv 3x3 (stride 1, pad 1) + bias + ReLU
# ----------------------------------------------------------------------------
def _conv3x3_relu_kernel(x_ref, w_ref, b_ref, m_ref, o_ref, *, W):
    # x_ref : (1, Cin, Lp)    bf16  padded input, spatial (H+2, W+2) flat on lanes
    # w_ref : (Cout, 9*Cin)   bf16  weights; K ordered (tap, cin), tap = dh*3 + dw
    # b_ref : (Cout, 1)       f32
    # m_ref : (1, Lp)         f32   1.0 on lanes that are real output pixels
    # o_ref : (1, Cout, Lp)   bf16  output, already in the next conv's padded layout
    Wp = W + 2
    x = x_ref[0]  # (Cin, Lp) bf16 — no per-tap casts, activations are bf16 end-to-end

    # Fold the 9 taps into the contraction dim: one MXU matmul with K = 9*Cin
    # instead of 9 small dots + 8 full read-modify-writes of an f32 accumulator.
    patches = jnp.concatenate(
        [_roll_lanes(x, -(dh * Wp + dw)) for dh in range(3) for dw in range(3)],
        axis=0,
    )  # (9*Cin, Lp) bf16
    acc = jnp.dot(w_ref[...], patches, preferred_element_type=jnp.float32)  # (Cout, Lp)

    # bias + ReLU fused in the epilogue; the mask zeroes the wrap columns and the
    # tail lanes so they become the zero padding ring of the next layer's input.
    y = (jnp.maximum(acc + b_ref[...], 0.0) * m_ref[...]).astype(o_ref.dtype)
    # place the valid pixels into the interior of the padded output layout:
    #   out[(h+1)*Wp + (w+1)] = y[h*Wp + w]; the border ring comes from zeroed lanes.
    o_ref[0] = _roll_lanes(y, Wp + 1)


def conv3x3_relu(x_pad, w_oihw, b, H, W):
    """Fused 3x3 conv (pad=1) + bias + ReLU on a padded-flat bf16 activation.

    x_pad : (N, Cin, Lp) bf16.  Returns (N, Cout, Lp) bf16 in the same layout,
    directly consumable by the next conv / pool kernel (no re-pad glue)."""
    N, _, Lp = x_pad.shape
    Hp, Wp = H + 2, W + 2
    assert Lp == _round_up(Hp * Wp, 128)
    Cout, Cin = w_oihw.shape[0], w_oihw.shape[1]

    # Pad input channels to a multiple of 8 (sublane packing) — only hits the
    # 3-channel stem; zero channels x zero weights leave the result unchanged.
    Cin_p = _round_up(max(Cin, 8), 8)
    if Cin_p != Cin:
        x_pad = jnp.pad(x_pad, ((0, 0), (0, Cin_p - Cin), (0, 0)))
        w_oihw = jnp.pad(w_oihw, ((0, 0), (0, Cin_p - Cin), (0, 0), (0, 0)))

    # (Cout, Cin, 3, 3) -> (Cout, 9*Cin), K ordered (tap, cin) to match `patches`.
    w_flat = (
        jnp.transpose(w_oihw, (0, 2, 3, 1)).reshape(Cout, 9 * Cin_p).astype(jnp.bfloat16)
    )
    b2 = b.reshape(Cout, 1).astype(jnp.float32)
    pos = jnp.arange(Lp, dtype=jnp.int32)
    mask = ((pos < H * Wp) & (pos % Wp < W)).astype(jnp.float32).reshape(1, Lp)

    kernel = functools.partial(_conv3x3_relu_kernel, W=W)
    flops = 2 * 9 * Cin_p * Cout * Lp * N
    bytes_accessed = N * Lp * (Cin_p + Cout) * 2 + Cout * 9 * Cin_p * 2 + Cout * 4 + Lp * 4

    # TODO(synk): for real VGG16 widths (224x224, 512ch) add a halo'd spatial-row
    # grid axis (marked "parallel" so v7x's two TensorCores split it) and re-size
    # vmem_limit_bytes; at these test sizes one block per image fits VMEM easily.
    return pl.pallas_call(
        kernel,
        out_shape=jax.ShapeDtypeStruct((N, Cout, Lp), jnp.bfloat16),
        grid_spec=pltpu.PrefetchScalarGridSpec(
            num_scalar_prefetch=0,
            grid=(N,),
            in_specs=[
                pl.BlockSpec((1, Cin_p, Lp), lambda n: (n, 0, 0)),
                pl.BlockSpec((Cout, 9 * Cin_p), lambda n: (0, 0)),
                pl.BlockSpec((Cout, 1), lambda n: (0, 0)),
                pl.BlockSpec((1, Lp), lambda n: (0, 0)),
            ],
            out_specs=pl.BlockSpec((1, Cout, Lp), lambda n: (n, 0, 0)),
        ),
        compiler_params=pltpu.CompilerParams(
            dimension_semantics=("parallel",),
            vmem_limit_bytes=32 * 1024 * 1024,
        ),
        cost_estimate=pl.CostEstimate(
            flops=flops, transcendentals=0, bytes_accessed=bytes_accessed
        ),
    )(x_pad, w_flat, b2, mask)


# ----------------------------------------------------------------------------
# Fused MaxPool 2x2 (stride 2) + re-pad: padded-flat in, padded-flat out
# ----------------------------------------------------------------------------
def _maxpool_pad_kernel(x_ref, s1_ref, s2_ref, o_ref, *, H, W):
    # x_ref : (1, C, Lp_in)   bf16  padded-flat input (spatial H x W)
    # s1/s2 : (Wp_in, Wp_out) bf16  one-hot column-selection matrices
    # o_ref : (1, C, Lp_out)  bf16  pooled output, already padded-flat for next conv
    Wp_in = W + 2
    Ho, Wo = H // 2, W // 2
    Wp_out = Wo + 2
    s1 = s1_ref[...]
    s2 = s2_ref[...]
    # zero the whole block first: padding-ring rows/cols and tail lanes stay 0.
    o_ref[...] = jnp.zeros(o_ref.shape, o_ref.dtype)
    for ho in range(Ho):  # static (unrolled) loop over output rows
        base = (2 * ho + 1) * Wp_in
        r0 = x_ref[0, :, pl.ds(base, Wp_in)]          # padded input row 2*ho+1
        r1 = x_ref[0, :, pl.ds(base + Wp_in, Wp_in)]  # padded input row 2*ho+2
        rm = jnp.maximum(r0, r1)                      # (C, Wp_in) vertical 2-max
        # horizontal 2-max + stride-2 column decimation + ring placement done as
        # a max of two one-hot selection matmuls (avoids strided lane loads).
        dec = jnp.maximum(
            jnp.dot(rm, s1, preferred_element_type=jnp.float32),
            jnp.dot(rm, s2, preferred_element_type=jnp.float32),
        )                                             # (C, Wp_out) f32
        o_ref[0, :, pl.ds((ho + 1) * Wp_out, Wp_out)] = dec.astype(o_ref.dtype)


def maxpool2x2_pad(x_pad, H, W):
    """2x2/stride-2 max pool fused with re-padding: (N,C,Lp_in) -> (N,C,Lp_out)."""
    assert H % 2 == 0 and W % 2 == 0
    N, C, Lp_in = x_pad.shape
    Wp_in = W + 2
    Ho, Wo = H // 2, W // 2
    Hp_out, Wp_out = Ho + 2, Wo + 2
    Lp_out = _round_up(Hp_out * Wp_out, 128)

    wo = jnp.arange(Wo)
    s1 = (
        jnp.zeros((Wp_in, Wp_out), jnp.float32)
        .at[2 * wo + 1, wo + 1]
        .set(1.0)
        .astype(jnp.bfloat16)
    )
    s2 = (
        jnp.zeros((Wp_in, Wp_out), jnp.float32)
        .at[2 * wo + 2, wo + 1]
        .set(1.0)
        .astype(jnp.bfloat16)
    )

    kernel = functools.partial(_maxpool_pad_kernel, H=H, W=W)
    return pl.pallas_call(
        kernel,
        out_shape=jax.ShapeDtypeStruct((N, C, Lp_out), jnp.bfloat16),
        grid_spec=pltpu.PrefetchScalarGridSpec(
            num_scalar_prefetch=0,
            grid=(N,),
            in_specs=[
                pl.BlockSpec((1, C, Lp_in), lambda n: (n, 0, 0)),
                pl.BlockSpec((Wp_in, Wp_out), lambda n: (0, 0)),
                pl.BlockSpec((Wp_in, Wp_out), lambda n: (0, 0)),
            ],
            out_specs=pl.BlockSpec((1, C, Lp_out), lambda n: (n, 0, 0)),
        ),
        compiler_params=pltpu.CompilerParams(
            dimension_semantics=("parallel",),
            vmem_limit_bytes=32 * 1024 * 1024,
        ),
        cost_estimate=pl.CostEstimate(
            flops=4 * N * Ho * C * Wp_in * Wp_out,
            transcendentals=0,
            bytes_accessed=N * C * (Lp_in + Lp_out) * 2 + 2 * Wp_in * Wp_out * 2,
        ),
    )(x_pad, s1, s2)


# ----------------------------------------------------------------------------
# "features" (vgg16-like Sequential, reduced widths, indices 0..22)
# ----------------------------------------------------------------------------
def make_features(key):
    cfg = [8, 8, "M", 16, 16, "M", 32, 32, 32, "M", 64, 64, 64]
    layers = []
    in_ch = 3
    idx = 0
    for v in cfg:
        if v == "M":
            layers.append((str(idx), "pool", None))
            idx += 1
        else:
            key, kw, kb = jax.random.split(key, 3)
            w_oihw = jax.random.normal(kw, (v, in_ch, 3, 3), jnp.float32) / math.sqrt(in_ch * 9)
            b = jax.random.normal(kb, (v,), jnp.float32) * 0.05
            layers.append((str(idx), "conv", (w_oihw, b)))
            idx += 1
            layers.append((str(idx), "relu", None))
            idx += 1
            in_ch = v
    return layers


LAYER_NAME_MAPPING = {"3": "relu1_2", "8": "relu2_2", "15": "relu3_3", "22": "relu4_3"}


def vgg_forward(x_nchw, features):
    """Mirrors VGG.forward: run the Sequential, collect outputs at indices 3/8/15/22.

    ReLU is fused into the preceding conv kernel (collection only ever happens at
    ReLU indices, so observable outputs are unchanged)."""
    N, _, H, W = x_nchw.shape
    x_pad = to_padded_flat(x_nchw)
    outs = []
    for name, kind, params in features:
        if kind == "conv":
            w, b = params
            x_pad = conv3x3_relu(x_pad, w, b, H, W)
        elif kind == "relu":
            pass  # fused into the preceding conv kernel's epilogue
        else:  # 2x2 max pool, stride 2 (fused with re-padding)
            x_pad = maxpool2x2_pad(x_pad, H, W)
            H, W = H // 2, W // 2
        if name in LAYER_NAME_MAPPING:
            # TODO(synk): emit a dense NCHW view as a second conv-kernel output
            # (dual out_specs) to drop this XLA slice/reshape pass entirely.
            outs.append(padded_flat_to_nchw(x_pad, H, W).astype(jnp.float32))
    return outs


# ----------------------------------------------------------------------------
# Pure-JAX reference mirroring the kernel numerics (bf16 activations between
# layers, bf16 MXU operands, f32 accumulation)
# ----------------------------------------------------------------------------
def _ref_forward(x_nchw, features):
    x = x_nchw.astype(jnp.bfloat16)
    outs = []
    for name, kind, params in features:
        if kind == "conv":
            w_oihw, b = params
            x = jax.lax.conv_general_dilated(
                x,
                w_oihw.astype(jnp.bfloat16),
                window_strides=(1, 1),
                padding="SAME",
                dimension_numbers=("NCHW", "OIHW", "NCHW"),
                preferred_element_type=jnp.float32,
            ) + b.reshape(1, -1, 1, 1)
        elif kind == "relu":
            x = jnp.maximum(x, 0.0).astype(jnp.bfloat16)
        else:
            N, C, H, W = x.shape
            x = x.reshape(N, C, H // 2, 2, W // 2, 2).max(axis=(3, 5))
        if name in LAYER_NAME_MAPPING:
            outs.append(x.astype(jnp.float32))
    return outs


if __name__ == "__main__":
    key = jax.random.PRNGKey(0)
    k_params, k_x = jax.random.split(key)
    features = make_features(k_params)

    x = jax.random.normal(k_x, (2, 3, 64, 64), jnp.float32)

    fwd = jax.jit(lambda inp: vgg_forward(inp, features))
    outs = fwd(x)
    for o in outs:
        jax.block_until_ready(o)

    expected_shapes = [(2, 8, 64, 64), (2, 16, 32, 32), (2, 32, 16, 16), (2, 64, 8, 8)]
    assert [tuple(o.shape) for o in outs] == expected_shapes

    refs = _ref_forward(x, features)
    for o, r in zip(outs, refs):
        assert jnp.allclose(o, r, rtol=2e-2, atol=2e-2), "mismatch vs reference"

    print("KERNEL_OK")
</pallas_src>

<mosaic_0001>
module attributes {stable_mosaic.version = 11 : i64} {
  func.func @k(%arg0: memref<8x128xf32, #tpu.memory_space<vmem>>, %arg1: memref<8x128xf32, #tpu.memory_space<vmem>>) attributes {dimension_semantics = [], scalar_prefetch = 0 : i64, scratch_operands = 0 : i64, tpu.core_type = #tpu.core_type<tc>} {
    %c0 = arith.constant 0 : index
    %c0_0 = arith.constant 0 : index
    %0 = vector.load %arg0[%c0, %c0_0] : memref<8x128xf32, #tpu.memory_space<vmem>>, vector<8x128xf32>
    %c1_i32 = arith.constant 1 : i32
    %1 = tpu.dynamic_rotate %0 by %c1_i32 dim 1 : vector<8x128xf32>, i32 -> vector<8x128xf32>
    %c0_1 = arith.constant 0 : index
    %c0_2 = arith.constant 0 : index
    %2 = vector.load %arg1[%c0_1, %c0_2] : memref<8x128xf32, #tpu.memory_space<vmem>>, vector<8x128xf32>
    tpu.vector_store %arg1[%c0_1, %c0_2], %1 {strides = array<i32>} : memref<8x128xf32, #tpu.memory_space<vmem>>, vector<8x128xf32>,
    return
  }
}

</mosaic_0001>

<llo_original>
// kernel: tpu_custom_call.1
$region0: #{tpu_custom_call.1}
  #allocation0 [shape = 'u32[]', space=smem, size = 0x4, offset = 0x4, fixed_abs, tag = 'smem constant byte address 0x4 - core index']
  #allocation1 [shape = 'u32[72,128]{1,0:T(1,128)}', space=vmem, size = 0x9000, scoped, tag = 'internal scratch']
  %s0 = inlined_call_operand.hbm [shape: f32[8,128], index: 0, kind: input, shape index: {}]
  %s1 = inlined_call_operand.hbm [shape: f32[8,128], index: 1, kind: output, shape index: {}]
  %s2 = sld [smem:[#allocation0]]
  $region18: #{tpu_custom_call.1} parent=0
    _
  %s4 = ssub.s32 1, %s2
  %s5 = scalar_select 0, %s4, %s2
  $region1: #{tpu_custom_call.1} parent=0
    #allocation2 [shape = 'u8[4096]{0}', space=vmem, size = 0x1000, scoped, tag = 'input window, operand 0, single buffered']
    #allocation3 [shape = 's32[1]{0}', space=sflag, size = 0x4, scoped, tag = 'scoped memory for tpu_custom_call.1']
    #allocation4 [shape = 's32[1]{0}', space=sflag, size = 0x4, scoped, tag = 'scoped memory for tpu_custom_call.1']
    #allocation5 [shape = 'u8[4096]{0}', space=vmem, size = 0x1000, scoped, tag = 'output window, operand 0, single buffered']
    %6 = vsyncpa [#allocation3], 0
    %7 = vsyncpa [#allocation4], 0
    // Predicated region
    $region2: #{tpu_custom_call.1} parent=1 // pred_check
      _
    $region3: #{tpu_custom_call.1} parent=1 // pred_check_branch
      %9 = sbr.rel (0) target = $region5
    $region4: #{tpu_custom_call.1} parent=1 // pred_region
      %11 = vsyncadd [#allocation3], 0
      %s13 = sshll.u32 %s0, 4
      %s14 = int_to_ptr.hbm [resolvable:$true] %s13
      %s15 = sshll.u32 [#allocation2], 4
      %s16 = int_to_ptr.vmem [resolvable:$true] %s15
      %18 = dma.hbm_to_vmem [thread:$0]  %s14, 128, %s16, [#allocation3]
    $region5: #{tpu_custom_call.1} parent=1 // pred_fallthru
      _
    // Predicated region
    $region6: #{tpu_custom_call.1} parent=1 // pred_check
      _
    $region7: #{tpu_custom_call.1} parent=1 // pred_check_branch
      %20 = sbr.rel (0) target = $region9
    $region8: #{tpu_custom_call.1} parent=1 // pred_region
      %22 = dma.done [#allocation3], 128
    $region9: #{tpu_custom_call.1} parent=1 // pred_fallthru
      _
    %v23 = vld [vmem:[#allocation2] sm:$0xff]
    %24 = vrot.lane.b32.xlu0 %v23, 1
    %v25 = vpop.permute.xlu0 %24
    %26 = vst [vmem:[#allocation5] sm:$0xff] %v25
    // Predicated region
    $region10: #{tpu_custom_call.1} parent=1 // pred_check
      _
    $region11: #{tpu_custom_call.1} parent=1 // pred_check_branch
      %28 = sbr.rel (0) target = $region13
    $region12: #{tpu_custom_call.1} parent=1 // pred_region
      %30 = vsyncadd [#allocation4], 0
      %s32 = sshll.u32 [#allocation5], 4
      %s33 = int_to_ptr.vmem [resolvable:$true] %s32
      %s34 = sshll.u32 %s1, 4
      %s35 = int_to_ptr.hbm [resolvable:$true] %s34
      %37 = dma.vmem_to_hbm [thread:$0]  %s33, 128, %s35, [#allocation4]
    $region13: #{tpu_custom_call.1} parent=1 // pred_fallthru
      _
    // Predicated region
    $region14: #{tpu_custom_call.1} parent=1 // pred_check
      _
    $region15: #{tpu_custom_call.1} parent=1 // pred_check_branch
      %39 = sbr.rel (0) target = $region17
    $region16: #{tpu_custom_call.1} parent=1 // pred_region
      %41 = dma.done [#allocation4], 128
    $region17: #{tpu_custom_call.1} parent=1 // pred_fallthru
      _
    %42 = vsyncpa [#allocation3], 1
    %43 = vsyncpa [#allocation4], 1

</llo_original>
